<compile_context>
chip_gen: v5e
topology: v5e:2x2
jax: 0.10.0
libtpu: 0.0.40
codegen_flags: <defaults>
</compile_context>

<pallas_src>
import functools

import jax
import jax.numpy as jnp
from jax import lax
from jax.experimental import pallas as pl
from jax.experimental.pallas import tpu as pltpu

DIM_NODE_ATTR = 512
DIM_ORC_NODE_ATTR = 26 + 125   # = 151
DIM_ORC_PAD = 256              # lane-aligned padded oracle feature width
LANE = 128
SUBLANE = 8


def _round_up(x, m):
    return ((x + m - 1) // m) * m


# ----------------------------------------------------------------------------
# Pallas kernel: fused forward (MLPs -> split-weight GCN -> pool -> head -> CE)
# ----------------------------------------------------------------------------
def _sub_activity_kernel(
    x_ref,        # [N, 512]           bf16
    orc_ref,      # [N, 256]           bf16 (zero padded)
    adj_ref,      # [N, N]             bf16
    pool_ref,     # [G_PAD, N]         bf16 (pad rows zero)
    y_ref,        # [G_PAD, C_PAD]     f32 one-hot (pad rows / lanes zero)
    wn_ref,       # [512, dim]         bf16
    bn_ref,       # [1, dim]           f32
    wo_ref,       # [256, dim]         bf16 (zero padded rows)
    bo_ref,       # [1, dim]           f32
    wg1a_ref,     # [dim, 2*dim]       bf16 (top half of Wg1)
    wg1b_ref,     # [dim, 2*dim]       bf16 (bottom half of Wg1)
    bg1_ref,      # [1, 2*dim]         f32
    wg2_ref,      # [2*dim, 2*dim]     bf16
    bg2_ref,      # [1, 2*dim]         f32
    wh_ref,       # [2*dim, C_PAD]     bf16 (zero padded cols)
    bh_ref,       # [1, C_PAD]         f32  (zero padded)
    logits_ref,   # out: [G_PAD, C_PAD] f32
    loss_ref,     # out: [1, 1]        f32
    *,
    num_classes,  # static: true C (pad lanes masked in the CE)
    num_graphs,   # static: true G (pad rows contribute 0 to the CE sum)
):
    f32 = jnp.float32
    bf16 = jnp.bfloat16

    # --- mlp_node / mlp_orc_node: Linear + ReLU (f32 accumulate, f32 epilogue) ---
    h_node = jnp.dot(x_ref[...], wn_ref[...], preferred_element_type=f32) + bn_ref[...]
    h_node = jnp.maximum(h_node, 0.0).astype(bf16)                     # [N, dim]
    h_orc = jnp.dot(orc_ref[...], wo_ref[...], preferred_element_type=f32) + bo_ref[...]
    h_orc = jnp.maximum(h_orc, 0.0).astype(bf16)                       # [N, dim]

    a = adj_ref[...]                                                   # [N, N] bf16

    # --- GCN layer 1: concat folded into split weight ---
    #   cat(h_node, h_orc) @ Wg1 == h_node @ Wg1[:dim] + h_orc @ Wg1[dim:]
    hw1 = (jnp.dot(h_node, wg1a_ref[...], preferred_element_type=f32)
           + jnp.dot(h_orc, wg1b_ref[...], preferred_element_type=f32))  # [N, 2*dim] f32
    h1 = jnp.dot(a, hw1.astype(bf16), preferred_element_type=f32) + bg1_ref[...]
    h1 = jnp.maximum(h1, 0.0).astype(bf16)                             # [N, 2*dim]

    # --- GCN layer 2 ---
    hw2 = jnp.dot(h1, wg2_ref[...], preferred_element_type=f32)        # [N, 2*dim] f32
    h2 = jnp.dot(a, hw2.astype(bf16), preferred_element_type=f32) + bg2_ref[...]
    h2 = jnp.maximum(h2, 0.0).astype(bf16)                             # [N, 2*dim]

    # --- SActHead: per-graph mean pool + Linear -> logits (fully tiled store) ---
    g = jnp.dot(pool_ref[...], h2, preferred_element_type=f32)         # [G_PAD, 2*dim] f32
    logits = jnp.dot(g.astype(bf16), wh_ref[...], preferred_element_type=f32) + bh_ref[...]
    logits_ref[...] = logits                                           # [G_PAD, C_PAD] full vst

    # --- F.cross_entropy(logits[:, :C], sact_cids), mean over true graphs ---
    col = lax.broadcasted_iota(jnp.int32, logits.shape, 1)
    valid = col < num_classes
    z_in = jnp.where(valid, logits, jnp.float32(-1e30))                # mask pad lanes
    m = jnp.max(z_in, axis=-1, keepdims=True)
    z = z_in - m
    lse = jnp.log(jnp.sum(jnp.exp(z), axis=-1, keepdims=True))
    logp = z - lse                                                     # [G_PAD, C_PAD]
    nll = -jnp.sum(y_ref[...] * logp, axis=-1, keepdims=True)          # [G_PAD, 1], pad rows = 0
    loss_ref[...] = jnp.sum(nll, axis=(0, 1), keepdims=True) * (1.0 / float(num_graphs))


# ----------------------------------------------------------------------------
# Wrapper: padding, bf16 casting, VMEM sizing, cost estimate, pallas_call.
# ----------------------------------------------------------------------------
def sub_activity_forward(x, orc, adj, pool, y_onehot, params):
    """Runs the fused Pallas forward. Returns (loss[1,1], logits[G,C])."""
    f32 = jnp.float32
    bf16 = jnp.bfloat16

    N = x.shape[0]
    G, C = y_onehot.shape
    dim = params["w_node"].shape[1]
    dim_hidden = 2 * dim
    c_pad = _round_up(max(C, LANE), LANE)
    n_pad = _round_up(N, SUBLANE)
    g_pad = _round_up(G, SUBLANE)

    # --- pad node count to a sublane multiple (zero rows/cols are inert) ---
    if n_pad != N:
        x = jnp.pad(x, ((0, n_pad - N), (0, 0)))
        orc = jnp.pad(orc, ((0, n_pad - N), (0, 0)))
        adj = jnp.pad(adj, ((0, n_pad - N), (0, n_pad - N)))
        pool = jnp.pad(pool, ((0, 0), (0, n_pad - N)))

    # --- pad graph count to a sublane multiple (pad rows of pool / y are zero) ---
    pool_p = jnp.pad(pool, ((0, g_pad - G), (0, 0)))
    y_p = jnp.pad(y_onehot.astype(f32), ((0, g_pad - G), (0, c_pad - C)))

    # --- pad oracle feature dim 151 -> 256 (zeros contribute 0 to the dot) ---
    orc_p = jnp.pad(orc, ((0, 0), (0, DIM_ORC_PAD - orc.shape[1])))
    w_orc_p = jnp.pad(params["w_orc"], ((0, DIM_ORC_PAD - params["w_orc"].shape[0]), (0, 0)))

    # --- pad class dim C -> c_pad (lane-dense logits store) ---
    w_head_p = jnp.pad(params["w_head"], ((0, 0), (0, c_pad - C)))
    b_head_p = jnp.pad(params["b_head"], ((0, 0), (0, c_pad - C)))

    # --- split Wg1: concat([h_node, h_orc]) @ Wg1 -> two partial matmuls ---
    wg1a = params["w_g1"][:dim, :]
    wg1b = params["w_g1"][dim:, :]

    inputs = (
        x.astype(bf16),
        orc_p.astype(bf16),
        adj.astype(bf16),
        pool_p.astype(bf16),
        y_p,
        params["w_node"].astype(bf16), params["b_node"].astype(f32),
        w_orc_p.astype(bf16), params["b_orc"].astype(f32),
        wg1a.astype(bf16), wg1b.astype(bf16), params["b_g1"].astype(f32),
        params["w_g2"].astype(bf16), params["b_g2"].astype(f32),
        w_head_p.astype(bf16), b_head_p.astype(f32),
    )

    # --- explicit scoped-VMEM sizing from the actual operand set ---
    in_bytes = sum(int(a.size) * a.dtype.itemsize for a in inputs)
    out_bytes = g_pad * c_pad * 4 + 4
    # live intermediates: h_node/h_orc/hw1/h1/hw2/h2 (bounded by a few [N, 2*dim] f32)
    inter_bytes = 6 * n_pad * dim_hidden * 4
    vmem_limit = int(min(2 * (in_bytes + out_bytes) + inter_bytes + (8 << 20), 120 << 20))

    # --- advisory cost estimate for the XLA scheduler ---
    flops = (
        2 * n_pad * (DIM_NODE_ATTR + DIM_ORC_PAD) * dim          # MLPs
        + 2 * (2 * n_pad * dim_hidden * dim_hidden)              # H @ W (both GCN layers)
        + 2 * (2 * n_pad * n_pad * dim_hidden)                   # A @ (HW) (both layers)
        + 2 * g_pad * n_pad * dim_hidden                         # mean pool
        + 2 * g_pad * dim_hidden * c_pad                         # head
    )
    cost = pl.CostEstimate(
        flops=int(flops),
        transcendentals=int(2 * g_pad * c_pad),
        bytes_accessed=int(in_bytes + out_bytes),
    )

    vmem_spec = pl.BlockSpec(memory_space=pltpu.MemorySpace.VMEM)
    logits_pad, loss = pl.pallas_call(
        functools.partial(_sub_activity_kernel, num_classes=C, num_graphs=G),
        out_shape=(
            jax.ShapeDtypeStruct((g_pad, c_pad), f32),   # logits_sact (fully tiled, padded)
            jax.ShapeDtypeStruct((1, 1), f32),           # loss_sact
        ),
        in_specs=[vmem_spec] * len(inputs),
        out_specs=(vmem_spec, vmem_spec),
        compiler_params=pltpu.CompilerParams(vmem_limit_bytes=vmem_limit),
        cost_estimate=cost,
    )(*inputs)

    return loss, logits_pad[:G, :C]


# ----------------------------------------------------------------------------
# Glue: deterministic parameter init, dense normalized adjacency, pool matrix.
# ----------------------------------------------------------------------------
def init_params(key, dim, num_sact_classes):
    dim_hidden = dim * 2
    ks = jax.random.split(key, 5)

    def lin(k, din, dout):
        scale = 1.0 / jnp.sqrt(jnp.float32(din))
        w = jax.random.normal(k, (din, dout), jnp.float32) * scale
        b = jnp.zeros((1, dout), jnp.float32)
        return w, b

    w_node, b_node = lin(ks[0], DIM_NODE_ATTR, dim)
    w_orc, b_orc = lin(ks[1], DIM_ORC_NODE_ATTR, dim)
    w_g1, b_g1 = lin(ks[2], dim_hidden, dim_hidden)
    w_g2, b_g2 = lin(ks[3], dim_hidden, dim_hidden)
    w_head, b_head = lin(ks[4], dim_hidden, num_sact_classes)
    return dict(
        w_node=w_node, b_node=b_node,
        w_orc=w_orc, b_orc=b_orc,
        w_g1=w_g1, b_g1=b_g1,
        w_g2=w_g2, b_g2=b_g2,
        w_head=w_head, b_head=b_head,
    )


def build_normalized_adjacency(edge_index, num_nodes):
    """Dense GCN adjacency: D^-1/2 (A + I) D^-1/2 (symmetric, self-loops)."""
    src, dst = edge_index[0], edge_index[1]
    a = jnp.zeros((num_nodes, num_nodes), jnp.float32)
    a = a.at[src, dst].set(1.0)
    a = a.at[dst, src].set(1.0)           # undirected message passing
    a = a + jnp.eye(num_nodes, dtype=jnp.float32)
    a = jnp.minimum(a, 1.0)
    deg = jnp.sum(a, axis=-1)
    d_inv_sqrt = 1.0 / jnp.sqrt(jnp.maximum(deg, 1e-12))
    return a * d_inv_sqrt[:, None] * d_inv_sqrt[None, :]


def build_pool_matrix(batch, num_graphs):
    """[G, N] row-normalized one-hot matrix implementing global mean pooling."""
    onehot = (batch[None, :] == jnp.arange(num_graphs)[:, None]).astype(jnp.float32)
    counts = jnp.maximum(jnp.sum(onehot, axis=-1, keepdims=True), 1.0)
    return onehot / counts


# ----------------------------------------------------------------------------
# Main
# ----------------------------------------------------------------------------
if __name__ == "__main__":
    # small but consistent shapes
    N = 16          # total nodes across the batch of graphs
    G = 2           # number of graphs
    NUM_SACT_CLASSES = 8
    DIM = 128       # module default is 1024; kept small, dim_hidden = 256

    key = jax.random.PRNGKey(0)
    k_x, k_orc, k_edge, k_lbl, k_par = jax.random.split(key, 5)

    # data.x, data.orc_node_attr (oracle branch of the forward)
    x = jax.random.normal(k_x, (N, DIM_NODE_ATTR), jnp.float32)
    orc_node_attr = jax.random.normal(k_orc, (N, DIM_ORC_NODE_ATTR), jnp.float32)

    # data.batch : first 8 nodes -> graph 0, last 8 -> graph 1
    batch = jnp.concatenate(
        [jnp.zeros((N // G,), jnp.int32), jnp.ones((N - N // G,), jnp.int32)]
    )

    # data.edge_index : a few deterministic within-graph edges
    E = 24
    src = jax.random.randint(k_edge, (E,), 0, N // G)
    dst = (src + 1 + jax.random.randint(jax.random.fold_in(k_edge, 1), (E,), 0, N // G - 1)) % (N // G)
    half = E // 2
    src = src.at[half:].add(N // G)   # second half of edges live in graph 1
    dst = dst.at[half:].add(N // G)
    edge_index = jnp.stack([src, dst], axis=0)

    # data.sact_cids
    sact_cids = jax.random.randint(k_lbl, (G,), 0, NUM_SACT_CLASSES)

    params = init_params(k_par, DIM, NUM_SACT_CLASSES)
    adj = build_normalized_adjacency(edge_index, N)
    pool = build_pool_matrix(batch, G)
    y_onehot = jax.nn.one_hot(sact_cids, NUM_SACT_CLASSES, dtype=jnp.float32)

    fwd = jax.jit(sub_activity_forward)
    loss, logits = fwd(x, orc_node_attr, adj, pool, y_onehot, params)
    jax.block_until_ready((loss, logits))

    assert logits.shape == (G, NUM_SACT_CLASSES)
    assert loss.shape == (1, 1)
    assert bool(jnp.isfinite(loss).all())
    assert bool(jnp.isfinite(logits).all())

    print("KERNEL_OK")
</pallas_src>

<mosaic_0001>
module attributes {stable_mosaic.version = 11 : i64} {
  func.func @_sub_activity_kernel(%arg0: memref<16x512xbf16, #tpu.memory_space<vmem>>, %arg1: memref<16x256xbf16, #tpu.memory_space<vmem>>, %arg2: memref<16x16xbf16, #tpu.memory_space<vmem>>, %arg3: memref<8x16xbf16, #tpu.memory_space<vmem>>, %arg4: memref<8x128xf32, #tpu.memory_space<vmem>>, %arg5: memref<512x128xbf16, #tpu.memory_space<vmem>>, %arg6: memref<1x128xf32, #tpu.memory_space<vmem>>, %arg7: memref<256x128xbf16, #tpu.memory_space<vmem>>, %arg8: memref<1x128xf32, #tpu.memory_space<vmem>>, %arg9: memref<128x256xbf16, #tpu.memory_space<vmem>>, %arg10: memref<128x256xbf16, #tpu.memory_space<vmem>>, %arg11: memref<1x256xf32, #tpu.memory_space<vmem>>, %arg12: memref<256x256xbf16, #tpu.memory_space<vmem>>, %arg13: memref<1x256xf32, #tpu.memory_space<vmem>>, %arg14: memref<256x128xbf16, #tpu.memory_space<vmem>>, %arg15: memref<1x128xf32, #tpu.memory_space<vmem>>, %arg16: memref<8x128xf32, #tpu.memory_space<vmem>>, %arg17: memref<1x1xf32, #tpu.memory_space<vmem>>) attributes {dimension_semantics = [], scalar_prefetch = 0 : i64, scratch_operands = 0 : i64, tpu.core_type = #tpu.core_type<tc>} {
    %c0 = arith.constant 0 : index
    %c0_0 = arith.constant 0 : index
    %0 = vector.load %arg0[%c0, %c0_0] : memref<16x512xbf16, #tpu.memory_space<vmem>>, vector<16x512xbf16>
    %c0_1 = arith.constant 0 : index
    %c0_2 = arith.constant 0 : index
    %1 = vector.load %arg5[%c0_1, %c0_2] : memref<512x128xbf16, #tpu.memory_space<vmem>>, vector<512x128xbf16>
    %cst = arith.constant dense<0.000000e+00> : vector<16x128xf32>
    %2 = tpu.matmul %0, %1, %cst {dimension_numbers = #tpu.dot_dimension_numbers<[1], [0], [0], [1], [0, 0, 1, 1], [], []>} : vector<16x512xbf16>, vector<512x128xbf16>, vector<16x128xf32> -> vector<16x128xf32>
    %c0_3 = arith.constant 0 : index
    %c0_4 = arith.constant 0 : index
    %3 = vector.load %arg6[%c0_3, %c0_4] : memref<1x128xf32, #tpu.memory_space<vmem>>, vector<1x128xf32>
    %4 = vector.broadcast %3 : vector<1x128xf32> to vector<16x128xf32>
    %5 = arith.addf %2, %4 : vector<16x128xf32>
    %cst_5 = arith.constant 0.000000e+00 : f32
    %6 = vector.broadcast %cst_5 : f32 to vector<16x128xf32>
    %7 = arith.maximumf %5, %6 : vector<16x128xf32>
    %8 = arith.truncf %7 : vector<16x128xf32> to vector<16x128xbf16>
    %c0_6 = arith.constant 0 : index
    %c0_7 = arith.constant 0 : index
    %9 = vector.load %arg1[%c0_6, %c0_7] : memref<16x256xbf16, #tpu.memory_space<vmem>>, vector<16x256xbf16>
    %c0_8 = arith.constant 0 : index
    %c0_9 = arith.constant 0 : index
    %10 = vector.load %arg7[%c0_8, %c0_9] : memref<256x128xbf16, #tpu.memory_space<vmem>>, vector<256x128xbf16>
    %cst_10 = arith.constant dense<0.000000e+00> : vector<16x128xf32>
    %11 = tpu.matmul %9, %10, %cst_10 {dimension_numbers = #tpu.dot_dimension_numbers<[1], [0], [0], [1], [0, 0, 1, 1], [], []>} : vector<16x256xbf16>, vector<256x128xbf16>, vector<16x128xf32> -> vector<16x128xf32>
    %c0_11 = arith.constant 0 : index
    %c0_12 = arith.constant 0 : index
    %12 = vector.load %arg8[%c0_11, %c0_12] : memref<1x128xf32, #tpu.memory_space<vmem>>, vector<1x128xf32>
    %13 = vector.broadcast %12 : vector<1x128xf32> to vector<16x128xf32>
    %14 = arith.addf %11, %13 : vector<16x128xf32>
    %cst_13 = arith.constant 0.000000e+00 : f32
    %15 = vector.broadcast %cst_13 : f32 to vector<16x128xf32>
    %16 = arith.maximumf %14, %15 : vector<16x128xf32>
    %17 = arith.truncf %16 : vector<16x128xf32> to vector<16x128xbf16>
    %c0_14 = arith.constant 0 : index
    %c0_15 = arith.constant 0 : index
    %18 = vector.load %arg2[%c0_14, %c0_15] : memref<16x16xbf16, #tpu.memory_space<vmem>>, vector<16x16xbf16>
    %c0_16 = arith.constant 0 : index
    %c0_17 = arith.constant 0 : index
    %19 = vector.load %arg9[%c0_16, %c0_17] : memref<128x256xbf16, #tpu.memory_space<vmem>>, vector<128x256xbf16>
    %cst_18 = arith.constant dense<0.000000e+00> : vector<16x256xf32>
    %20 = tpu.matmul %8, %19, %cst_18 {dimension_numbers = #tpu.dot_dimension_numbers<[1], [0], [0], [1], [0, 0, 1, 1], [], []>} : vector<16x128xbf16>, vector<128x256xbf16>, vector<16x256xf32> -> vector<16x256xf32>
    %c0_19 = arith.constant 0 : index
    %c0_20 = arith.constant 0 : index
    %21 = vector.load %arg10[%c0_19, %c0_20] : memref<128x256xbf16, #tpu.memory_space<vmem>>, vector<128x256xbf16>
    %cst_21 = arith.constant dense<0.000000e+00> : vector<16x256xf32>
    %22 = tpu.matmul %17, %21, %cst_21 {dimension_numbers = #tpu.dot_dimension_numbers<[1], [0], [0], [1], [0, 0, 1, 1], [], []>} : vector<16x128xbf16>, vector<128x256xbf16>, vector<16x256xf32> -> vector<16x256xf32>
    %23 = arith.addf %20, %22 : vector<16x256xf32>
    %24 = arith.truncf %23 : vector<16x256xf32> to vector<16x256xbf16>
    %cst_22 = arith.constant dense<0.000000e+00> : vector<16x256xf32>
    %25 = tpu.matmul %18, %24, %cst_22 {dimension_numbers = #tpu.dot_dimension_numbers<[1], [0], [0], [1], [0, 0, 1, 1], [], []>} : vector<16x16xbf16>, vector<16x256xbf16>, vector<16x256xf32> -> vector<16x256xf32>
    %c0_23 = arith.constant 0 : index
    %c0_24 = arith.constant 0 : index
    %26 = vector.load %arg11[%c0_23, %c0_24] : memref<1x256xf32, #tpu.memory_space<vmem>>, vector<1x256xf32>
    %27 = vector.broadcast %26 : vector<1x256xf32> to vector<16x256xf32>
    %28 = arith.addf %25, %27 : vector<16x256xf32>
    %cst_25 = arith.constant 0.000000e+00 : f32
    %29 = vector.broadcast %cst_25 : f32 to vector<16x256xf32>
    %30 = arith.maximumf %28, %29 : vector<16x256xf32>
    %31 = arith.truncf %30 : vector<16x256xf32> to vector<16x256xbf16>
    %c0_26 = arith.constant 0 : index
    %c0_27 = arith.constant 0 : index
    %32 = vector.load %arg12[%c0_26, %c0_27] : memref<256x256xbf16, #tpu.memory_space<vmem>>, vector<256x256xbf16>
    %cst_28 = arith.constant dense<0.000000e+00> : vector<16x256xf32>
    %33 = tpu.matmul %31, %32, %cst_28 {dimension_numbers = #tpu.dot_dimension_numbers<[1], [0], [0], [1], [0, 0, 1, 1], [], []>} : vector<16x256xbf16>, vector<256x256xbf16>, vector<16x256xf32> -> vector<16x256xf32>
    %34 = arith.truncf %33 : vector<16x256xf32> to vector<16x256xbf16>
    %cst_29 = arith.constant dense<0.000000e+00> : vector<16x256xf32>
    %35 = tpu.matmul %18, %34, %cst_29 {dimension_numbers = #tpu.dot_dimension_numbers<[1], [0], [0], [1], [0, 0, 1, 1], [], []>} : vector<16x16xbf16>, vector<16x256xbf16>, vector<16x256xf32> -> vector<16x256xf32>
    %c0_30 = arith.constant 0 : index
    %c0_31 = arith.constant 0 : index
    %36 = vector.load %arg13[%c0_30, %c0_31] : memref<1x256xf32, #tpu.memory_space<vmem>>, vector<1x256xf32>
    %37 = vector.broadcast %36 : vector<1x256xf32> to vector<16x256xf32>
    %38 = arith.addf %35, %37 : vector<16x256xf32>
    %cst_32 = arith.constant 0.000000e+00 : f32
    %39 = vector.broadcast %cst_32 : f32 to vector<16x256xf32>
    %40 = arith.maximumf %38, %39 : vector<16x256xf32>
    %41 = arith.truncf %40 : vector<16x256xf32> to vector<16x256xbf16>
    %c0_33 = arith.constant 0 : index
    %c0_34 = arith.constant 0 : index
    %42 = vector.load %arg3[%c0_33, %c0_34] : memref<8x16xbf16, #tpu.memory_space<vmem>>, vector<8x16xbf16>
    %cst_35 = arith.constant dense<0.000000e+00> : vector<8x256xf32>
    %43 = tpu.matmul %42, %41, %cst_35 {dimension_numbers = #tpu.dot_dimension_numbers<[1], [0], [0], [1], [0, 0, 1, 1], [], []>} : vector<8x16xbf16>, vector<16x256xbf16>, vector<8x256xf32> -> vector<8x256xf32>
    %44 = arith.truncf %43 : vector<8x256xf32> to vector<8x256xbf16>
    %c0_36 = arith.constant 0 : index
    %c0_37 = arith.constant 0 : index
    %45 = vector.load %arg14[%c0_36, %c0_37] : memref<256x128xbf16, #tpu.memory_space<vmem>>, vector<256x128xbf16>
    %cst_38 = arith.constant dense<0.000000e+00> : vector<8x128xf32>
    %46 = tpu.matmul %44, %45, %cst_38 {dimension_numbers = #tpu.dot_dimension_numbers<[1], [0], [0], [1], [0, 0, 1, 1], [], []>} : vector<8x256xbf16>, vector<256x128xbf16>, vector<8x128xf32> -> vector<8x128xf32>
    %c0_39 = arith.constant 0 : index
    %c0_40 = arith.constant 0 : index
    %47 = vector.load %arg15[%c0_39, %c0_40] : memref<1x128xf32, #tpu.memory_space<vmem>>, vector<1x128xf32>
    %48 = vector.broadcast %47 : vector<1x128xf32> to vector<8x128xf32>
    %49 = arith.addf %46, %48 : vector<8x128xf32>
    %c0_41 = arith.constant 0 : index
    %c0_42 = arith.constant 0 : index
    %50 = vector.load %arg16[%c0_41, %c0_42] : memref<8x128xf32, #tpu.memory_space<vmem>>, vector<8x128xf32>
    tpu.vector_store %arg16[%c0_41, %c0_42], %49 {strides = array<i32>} : memref<8x128xf32, #tpu.memory_space<vmem>>, vector<8x128xf32>,
    %51 = tpu.iota {dimensions = array<i32: 1>} : vector<8x128xi32>
    %c8_i32 = arith.constant 8 : i32
    %52 = vector.broadcast %c8_i32 : i32 to vector<8x128xi32>
    %53 = arith.cmpi slt, %51, %52 : vector<8x128xi32>
    %cst_43 = arith.constant -1.000000e+30 : f32
    %54 = vector.broadcast %cst_43 : f32 to vector<8x128xf32>
    %55 = arith.select %53, %49, %54 : vector<8x128xi1>, vector<8x128xf32>
    %cst_44 = arith.constant dense<0xFF800000> : vector<8xf32>
    %56 = vector.multi_reduction <maximumf>, %55, %cst_44 [1] : vector<8x128xf32> to vector<8xf32>
    %57 = vector.shape_cast %56 : vector<8xf32> to vector<8x1xf32>
    %58 = vector.broadcast %57 : vector<8x1xf32> to vector<8x128xf32>
    %59 = arith.subf %55, %58 : vector<8x128xf32>
    %60 = math.exp %59 : vector<8x128xf32>
    %cst_45 = arith.constant dense<0.000000e+00> : vector<8xf32>
    %61 = vector.multi_reduction <add>, %60, %cst_45 [1] : vector<8x128xf32> to vector<8xf32>
    %62 = vector.shape_cast %61 : vector<8xf32> to vector<8x1xf32>
    %63 = math.log %62 : vector<8x1xf32>
    %64 = vector.broadcast %63 : vector<8x1xf32> to vector<8x128xf32>
    %65 = arith.subf %59, %64 : vector<8x128xf32>
    %c0_46 = arith.constant 0 : index
    %c0_47 = arith.constant 0 : index
    %66 = vector.load %arg4[%c0_46, %c0_47] : memref<8x128xf32, #tpu.memory_space<vmem>>, vector<8x128xf32>
    %67 = arith.mulf %66, %65 : vector<8x128xf32>
    %cst_48 = arith.constant dense<0.000000e+00> : vector<8xf32>
    %68 = vector.multi_reduction <add>, %67, %cst_48 [1] : vector<8x128xf32> to vector<8xf32>
    %69 = vector.shape_cast %68 : vector<8xf32> to vector<8x1xf32>
    %cst_49 = arith.constant 0.000000e+00 : f32
    %70 = vector.broadcast %cst_49 : f32 to vector<8x1xf32>
    %71 = arith.subf %70, %69 : vector<8x1xf32>
    %72 = vector.shape_cast %71 : vector<8x1xf32> to vector<1x8x1xf32>
    %cst_50 = arith.constant dense<0.000000e+00> : vector<1xf32>
    %73 = vector.multi_reduction <add>, %72, %cst_50 [1, 2] : vector<1x8x1xf32> to vector<1xf32>
    %74 = vector.shape_cast %73 : vector<1xf32> to vector<1x1x1xf32>
    %75 = vector.extract %74[0, 0, 0] : f32 from vector<1x1x1xf32>
    %76 = vector.broadcast %75 : f32 to vector<1x1xf32>
    %cst_51 = arith.constant 5.000000e-01 : f32
    %77 = vector.broadcast %cst_51 : f32 to vector<1x1xf32>
    %78 = arith.mulf %76, %77 : vector<1x1xf32>
    %c0_52 = arith.constant 0 : index
    %c0_53 = arith.constant 0 : index
    %79 = vector.load %arg17[%c0_52, %c0_53] : memref<1x1xf32, #tpu.memory_space<vmem>>, vector<1x1xf32>
    tpu.vector_store %arg17[%c0_52, %c0_53], %78 {strides = array<i32>} : memref<1x1xf32, #tpu.memory_space<vmem>>, vector<1x1xf32>,
    return
  }
}

</mosaic_0001>

<llo_original>
// kernel: sub_activity_forward.1
$region0: #{sub_activity_forward.1}
  #allocation0 [shape = 'u32[]', space=smem, size = 0x4, offset = 0x4, fixed_abs, tag = 'smem constant byte address 0x4 - core index']
  #allocation1 [shape = 'u32[72,128]{1,0:T(1,128)}', space=vmem, size = 0x9000, scoped, tag = 'internal scratch']
  %s0 = inlined_call_operand.vmem [shape: bf16[16,512], index: 0, kind: input, shape index: {}]
  %s1 = inlined_call_operand.vmem [shape: bf16[16,256], index: 1, kind: input, shape index: {}]
  %s2 = inlined_call_operand.vmem [shape: bf16[16,16], index: 2, kind: input, shape index: {}]
  %s3 = inlined_call_operand.vmem [shape: bf16[8,16], index: 3, kind: input, shape index: {}]
  %s4 = inlined_call_operand.vmem [shape: f32[8,128], index: 4, kind: input, shape index: {}]
  %s5 = inlined_call_operand.vmem [shape: bf16[512,128], index: 5, kind: input, shape index: {}]
  %s6 = inlined_call_operand.vmem [shape: f32[1,128], index: 6, kind: input, shape index: {}]
  %s7 = inlined_call_operand.vmem [shape: bf16[256,128], index: 7, kind: input, shape index: {}]
  %s8 = inlined_call_operand.vmem [shape: f32[1,128], index: 8, kind: input, shape index: {}]
  %s9 = inlined_call_operand.vmem [shape: bf16[128,256], index: 9, kind: input, shape index: {}]
  %s10 = inlined_call_operand.vmem [shape: bf16[128,256], index: 10, kind: input, shape index: {}]
  %s11 = inlined_call_operand.vmem [shape: f32[1,256], index: 11, kind: input, shape index: {}]
  %s12 = inlined_call_operand.vmem [shape: bf16[256,256], index: 12, kind: input, shape index: {}]
  %s13 = inlined_call_operand.vmem [shape: f32[1,256], index: 13, kind: input, shape index: {}]
  %s14 = inlined_call_operand.vmem [shape: bf16[256,128], index: 14, kind: input, shape index: {}]
  %s15 = inlined_call_operand.vmem [shape: f32[1,128], index: 15, kind: input, shape index: {}]
  %s16 = inlined_call_operand.vmem [shape: f32[8,128], index: 16, kind: output, shape index: {0}]
  %s17 = inlined_call_operand.hbm [shape: f32[1,1], index: 17, kind: output, shape index: {1}]
  %18 = xla_tuple %s16, %s17
  %s19 = sld [smem:[#allocation0]]
  $region82: #{sub_activity_forward.1} parent=0
    _
  %s21 = ssub.s32 1, %s19
  %s22 = scalar_select 0, %s21, %s19
  $region1: #{sub_activity_forward.1} parent=0
    #allocation2 [shape = 'u8[512]{0}', space=vmem, size = 0x400, scoped, tag = 'output window, operand 1, single buffered']
    #allocation3 [shape = 's32[1]{0}', space=sflag, size = 0x4, scoped, tag = 'scoped memory for sub_activity_forward.1']
    %23 = vsyncpa [#allocation3], 0
    // Predicated region
    $region2: #{sub_activity_forward.1} parent=1 // pred_check
      _
    $region3: #{sub_activity_forward.1} parent=1 // pred_check_branch
      %25 = sbr.rel (0) target = $region5
    $region4: #{sub_activity_forward.1} parent=1 // pred_region
      _
    $region5: #{sub_activity_forward.1} parent=1 // pred_fallthru
      _
    // Predicated region
    $region6: #{sub_activity_forward.1} parent=1 // pred_check
      _
    $region7: #{sub_activity_forward.1} parent=1 // pred_check_branch
      %27 = sbr.rel (0) target = $region9
    $region8: #{sub_activity_forward.1} parent=1 // pred_region
      _
    $region9: #{sub_activity_forward.1} parent=1 // pred_fallthru
      _
    // Predicated region
    $region10: #{sub_activity_forward.1} parent=1 // pred_check
      _
    $region11: #{sub_activity_forward.1} parent=1 // pred_check_branch
      %29 = sbr.rel (0) target = $region13
    $region12: #{sub_activity_forward.1} parent=1 // pred_region
      _
    $region13: #{sub_activity_forward.1} parent=1 // pred_fallthru
      _
    // Predicated region
    $region14: #{sub_activity_forward.1} parent=1 // pred_check
      _
    $region15: #{sub_activity_forward.1} parent=1 // pred_check_branch
      %31 = sbr.rel (0) target = $region17
    $region16: #{sub_activity_forward.1} parent=1 // pred_region
      _
    $region17: #{sub_activity_forward.1} parent=1 // pred_fallthru
      _
    // Predicated region
    $region18: #{sub_activity_forward.1} parent=1 // pred_check
      _
    $region19: #{sub_activity_forward.1} parent=1 // pred_check_branch
      %33 = sbr.rel (0) target = $region21
    $region20: #{sub_activity_forward.1} parent=1 // pred_region
      _
    $region21: #{sub_activity_forward.1} parent=1 // pred_fallthru
      _
    // Predicated region
    $region22: #{sub_activity_forward.1} parent=1 // pred_check
      _
    $region23: #{sub_activity_forward.1} parent=1 // pred_check_branch
      %35 = sbr.rel (0) target = $region25
    $region24: #{sub_activity_forward.1} parent=1 // pred_region
      _
    $region25: #{sub_activity_forward.1} parent=1 // pred_fallthru
      _
    // Predicated region
    $region26: #{sub_activity_forward.1} parent=1 // pred_check
      _
    $region27: #{sub_activity_forward.1} parent=1 // pred_check_branch
      %37 = sbr.rel (0) target = $region29
    $region28: #{sub_activity_forward.1} parent=1 // pred_region
      _
    $region29: #{sub_activity_forward.1} parent=1 // pred_fallthru
      _
    // Predicated region
    $region30: #{sub_activity_forward.1} parent=1 // pred_check
      _
    $region31: #{sub_activity_forward.1} parent=1 // pred_check_branch
      %39 = sbr.rel (0) target = $region33
    $region32: #{sub_activity_forward.1} parent=1 // pred_region
      _
    $region33: #{sub_activity_forward.1} parent=1 // pred_fallthru
      _
    // Predicated region
    $region34: #{sub_activity_forward.1} parent=1 // pred_check
      _
    $region35: #{sub_activity_forward.1} parent=1 // pred_check_branch
      %41 = sbr.rel (0) target = $region37
    $region36: #{sub_activity_forward.1} parent=1 // pred_region
      _
    $region37: #{sub_activity_forward.1} parent=1 // pred_fallthru
      _
    // Predicated region
    $region38: #{sub_activity_forward.1} parent=1 // pred_check
      _
    $region39: #{sub_activity_forward.1} parent=1 // pred_check_branch
      %43 = sbr.rel (0) target = $region41
    $region40: #{sub_activity_forward.1} parent=1 // pred_region
      _
    $region41: #{sub_activity_forward.1} parent=1 // pred_fallthru
      _
    // Predicated region
    $region42: #{sub_activity_forward.1} parent=1 // pred_check
      _
    $region43: #{sub_activity_forward.1} parent=1 // pred_check_branch
      %45 = sbr.rel (0) target = $region45
    $region44: #{sub_activity_forward.1} parent=1 // pred_region
      _
    $region45: #{sub_activity_forward.1} parent=1 // pred_fallthru
      _
    // Predicated region
    $region46: #{sub_activity_forward.1} parent=1 // pred_check
      _
    $region47: #{sub_activity_forward.1} parent=1 // pred_check_branch
      %47 = sbr.rel (0) target = $region49
    $region48: #{sub_activity_forward.1} parent=1 // pred_region
      _
    $region49: #{sub_activity_forward.1} parent=1 // pred_fallthru
      _
    // Predicated region
    $region50: #{sub_activity_forward.1} parent=1 // pred_check
      _
    $region51: #{sub_activity_forward.1} parent=1 // pred_check_branch
      %49 = sbr.rel (0) target = $region53
    $region52: #{sub_activity_forward.1} parent=1 // pred_region
      _
    $region53: #{sub_activity_forward.1} parent=1 // pred_fallthru
      _
    // Predicated region
    $region54: #{sub_activity_forward.1} parent=1 // pred_check
      _
    $region55: #{sub_activity_forward.1} parent=1 // pred_check_branch
      %51 = sbr.rel (0) target = $region57
    $region56: #{sub_activity_forward.1} parent=1 // pred_region
      _
    $region57: #{sub_activity_forward.1} parent=1 // pred_fallthru
      _
    // Predicated region
    $region58: #{sub_activity_forward.1} parent=1 // pred_check
      _
    $region59: #{sub_activity_forward.1} parent=1 // pred_check_branch
      %53 = sbr.rel (0) target = $region61
    $region60: #{sub_activity_forward.1} parent=1 // pred_region
      _
    $region61: #{sub_activity_forward.1} parent=1 // pred_fallthru
      _
    // Predicated region
    $region62: #{sub_activity_forward.1} parent=1 // pred_check
      _
    $region63: #{sub_activity_forward.1} parent=1 // pred_check_branch
      %55 = sbr.rel (0) target = $region65
    $region64: #{sub_activity_forward.1} parent=1 // pred_region
      _
    $region65: #{sub_activity_forward.1} parent=1 // pred_fallthru
      _
    %v57 = vld [vmem:[%s0] sm:$0xff]
    %v58 = vld [vmem:[%s0 + $0x8] sm:$0xff]
    %v59 = vld [vmem:[%s0 + $0x10] sm:$0xff]
    %v60 = vld [vmem:[%s0 + $0x18] sm:$0xff]
    %v61 = vld [vmem:[%s5] sm:$0xf]
    %v62 = vld [vmem:[%s5 + $0x4] sm:$0xf]
    %v63 = vld [vmem:[%s5 + $0x8] sm:$0xf]
    %v64 = vld [vmem:[%s5 + $0xc] sm:$0xf]
    %v65 = vld [vmem:[%s5 + $0x10] sm:$0xf]
    %v66 = vld [vmem:[%s5 + $0x14] sm:$0xf]
    %v67 = vld [vmem:[%s5 + $0x18] sm:$0xf]
    %v68 = vld [vmem:[%s5 + $0x1c] sm:$0xf]
    %v69 = vld [vmem:[%s5 + $0x20] sm:$0xf]
    %v70 = vld [vmem:[%s5 + $0x24] sm:$0xf]
    %v71 = vld [vmem:[%s5 + $0x28] sm:$0xf]
    %v72 = vld [vmem:[%s5 + $0x2c] sm:$0xf]
    %v73 = vld [vmem:[%s5 + $0x30] sm:$0xf]
    %v74 = vld [vmem:[%s5 + $0x34] sm:$0xf]
    %v75 = vld [vmem:[%s5 + $0x38] sm:$0xf]
    %v76 = vld [vmem:[%s5 + $0x3c] sm:$0xf]
    %v77 = vld [vmem:[%s5 + $0x40] sm:$0xf]
    %v78 = vld [vmem:[%s5 + $0x44] sm:$0xf]
    %v79 = vld [vmem:[%s5 + $0x48] sm:$0xf]
    %v80 = vld [vmem:[%s5 + $0x4c] sm:$0xf]
    %v81 = vld [vmem:[%s5 + $0x50] sm:$0xf]
    %v82 = vld [vmem:[%s5 + $0x54] sm:$0xf]
    %v83 = vld [vmem:[%s5 + $0x58] sm:$0xf]
    %v84 = vld [vmem:[%s5 + $0x5c] sm:$0xf]
    %v85 = vld [vmem:[%s5 + $0x60] sm:$0xf]
    %v86 = vld [vmem:[%s5 + $0x64] sm:$0xf]
    %v87 = vld [vmem:[%s5 + $0x68] sm:$0xf]
    %v88 = vld [vmem:[%s5 + $0x6c] sm:$0xf]
    %v89 = vld [vmem:[%s5 + $0x70] sm:$0xf]
    %v90 = vld [vmem:[%s5 + $0x74] sm:$0xf]
    %v91 = vld [vmem:[%s5 + $0x78] sm:$0xf]
    %v92 = vld [vmem:[%s5 + $0x7c] sm:$0xf]
    %v93 = vld [vmem:[%s5 + $0x80] sm:$0xf]
    %v94 = vld [vmem:[%s5 + $0x84] sm:$0xf]
    %v95 = vld [vmem:[%s5 + $0x88] sm:$0xf]
    %v96 = vld [vmem:[%s5 + $0x8c] sm:$0xf]
    %v97 = vld [vmem:[%s5 + $0x90] sm:$0xf]
    %v98 = vld [vmem:[%s5 + $0x94] sm:$0xf]
    %v99 = vld [vmem:[%s5 + $0x98] sm:$0xf]
    %v100 = vld [vmem:[%s5 + $0x9c] sm:$0xf]
    %v101 = vld [vmem:[%s5 + $0xa0] sm:$0xf]
    %v102 = vld [vmem:[%s5 + $0xa4] sm:$0xf]
    %v103 = vld [vmem:[%s5 + $0xa8] sm:$0xf]
    %v104 = vld [vmem:[%s5 + $0xac] sm:$0xf]
    %v105 = vld [vmem:[%s5 + $0xb0] sm:$0xf]
    %v106 = vld [vmem:[%s5 + $0xb4] sm:$0xf]
    %v107 = vld [vmem:[%s5 + $0xb8] sm:$0xf]
    %v108 = vld [vmem:[%s5 + $0xbc] sm:$0xf]
    %v109 = vld [vmem:[%s5 + $0xc0] sm:$0xf]
    %v110 = vld [vmem:[%s5 + $0xc4] sm:$0xf]
    %v111 = vld [vmem:[%s5 + $0xc8] sm:$0xf]
    %v112 = vld [vmem:[%s5 + $0xcc] sm:$0xf]
    %v113 = vld [vmem:[%s5 + $0xd0] sm:$0xf]
    %v114 = vld [vmem:[%s5 + $0xd4] sm:$0xf]
    %v115 = vld [vmem:[%s5 + $0xd8] sm:$0xf]
    %v116 = vld [vmem:[%s5 + $0xdc] sm:$0xf]
    %v117 = vld [vmem:[%s5 + $0xe0] sm:$0xf]
    %v118 = vld [vmem:[%s5 + $0xe4] sm:$0xf]
    %v119 = vld [vmem:[%s5 + $0xe8] sm:$0xf]
    %v120 = vld [vmem:[%s5 + $0xec] sm:$0xf]
    %v121 = vld [vmem:[%s5 + $0xf0] sm:$0xf]
    %v122 = vld [vmem:[%s5 + $0xf4] sm:$0xf]
    %v123 = vld [vmem:[%s5 + $0xf8] sm:$0xf]
    %v124 = vld [vmem:[%s5 + $0xfc] sm:$0xf]
    %v125 = vld [vmem:[%s6] sm:$0x1]
    %v127 = vperm.slane %v125, 0
    %v133 = vunpack.c.l.b16 %v57
    %v134 = vunpack.c.h.b16 %v57
    %v135 = vunpack.c.l.b16 %v58
    %v136 = vunpack.c.h.b16 %v58
    %v137 = vunpack.c.l.b16 %v59
    %v138 = vunpack.c.h.b16 %v59
    %v139 = vunpack.c.l.b16 %v60
    %v140 = vunpack.c.h.b16 %v60
    %v141 = vpack.c.b16 %v137, %v133
    %v142 = vpack.c.b16 %v138, %v134
    %v143 = vpack.c.b16 %v139, %v135
    %v144 = vpack.c.b16 %v140, %v136
    %v213 = vunpack.c.l.b16 %v61
    %v214 = vunpack.c.l.b16 %v62
    %v215 = vunpack.c.l.b16 %v63
    %v216 = vunpack.c.l.b16 %v64
    %v217 = vunpack.c.l.b16 %v65
    %v218 = vunpack.c.l.b16 %v66
    %v219 = vunpack.c.l.b16 %v67
    %v220 = vunpack.c.l.b16 %v68
    %v221 = vunpack.c.l.b16 %v69
    %v222 = vunpack.c.l.b16 %v70
    %v223 = vunpack.c.l.b16 %v71
    %v224 = vunpack.c.l.b16 %v72
    %v225 = vunpack.c.l.b16 %v73
    %v226 = vunpack.c.l.b16 %v74
    %v227 = vunpack.c.l.b16 %v75
    %v228 = vunpack.c.l.b16 %v76
    %v229 = vunpack.c.l.b16 %v77
    %v230 = vunpack.c.l.b16 %v78
    %v231 = vunpack.c.l.b16 %v79
    %v232 = vunpack.c.l.b16 %v80
    %v233 = vunpack.c.l.b16 %v81
    %v234 = vunpack.c.l.b16 %v82
    %v235 = vunpack.c.l.b16 %v83
    %v236 = vunpack.c.l.b16 %v84
    %v237 = vunpack.c.l.b16 %v85
    %v238 = vunpack.c.l.b16 %v86
    %v239 = vunpack.c.l.b16 %v87
    %v240 = vunpack.c.l.b16 %v88
    %v241 = vunpack.c.l.b16 %v89
    %v242 = vunpack.c.l.b16 %v90
    %v243 = vunpack.c.l.b16 %v91
    %v244 = vunpack.c.l.b16 %v92
    %v245 = vunpack.c.l.b16 %v93
    %v246 = vunpack.c.l.b16 %v94
    %v247 = vunpack.c.l.b16 %v95
    %v248 = vunpack.c.l.b16 %v96
    %v249 = vunpack.c.l.b16 %v97
    %v250 = vunpack.c.l.b16 %v98
    %v251 = vunpack.c.l.b16 %v99
    %v252 = vunpack.c.l.b16 %v100
    %v253 = vunpack.c.l.b16 %v101
    %v254 = vunpack.c.l.b16 %v102
    %v255 = vunpack.c.l.b16 %v103
    %v256 = vunpack.c.l.b16 %v104
    %v257 = vunpack.c.l.b16 %v105
    %v258 = vunpack.c.l.b16 %v106
    %v259 = vunpack.c.l.b16 %v107
    %v260 = vunpack.c.l.b16 %v108
    %v261 = vunpack.c.l.b16 %v109
    %v262 = vunpack.c.l.b16 %v110
    %v263 = vunpack.c.l.b16 %v111
    %v264 = vunpack.c.l.b16 %v112
    %v265 = vunpack.c.l.b16 %v113
    %v266 = vunpack.c.l.b16 %v114
    %v267 = vunpack.c.l.b16 %v115
    %v268 = vunpack.c.l.b16 %v116
    %v269 = vunpack.c.l.b16 %v117
    %v270 = vunpack.c.l.b16 %v118
    %v271 = vunpack.c.l.b16 %v119
    %v272 = vunpack.c.l.b16 %v120
    %v273 = vunpack.c.l.b16 %v121
    %v274 = vunpack.c.l.b16 %v122
    %v275 = vunpack.c.l.b16 %v123
    %v276 = vunpack.c.l.b16 %v124
    %v277 = vpack.c.b16 %v214, %v213
    %v278 = vpack.c.b16 %v216, %v215
    %v279 = vpack.c.b16 %v218, %v217
    %v280 = vpack.c.b16 %v220, %v219
    %v281 = vpack.c.b16 %v222, %v221
    %v282 = vpack.c.b16 %v224, %v223
    %v283 = vpack.c.b16 %v226, %v225
    %v284 = vpack.c.b16 %v228, %v227
    %v285 = vpack.c.b16 %v230, %v229
    %v286 = vpack.c.b16 %v232, %v231
    %v287 = vpack.c.b16 %v234, %v233
    %v288 = vpack.c.b16 %v236, %v235
    %v289 = vpack.c.b16 %v238, %v237
    %v290 = vpack.c.b16 %v240, %v239
    %v291 = vpack.c.b16 %v242, %v241
    %v292 = vpack.c.b16 %v244, %v243
    %v293 = vpack.c.b16 %v246, %v245
    %v294 = vpack.c.b16 %v248, %v247
    %v295 = vpack.c.b16 %v250, %v249
    %v296 = vpack.c.b16 %v252, %v251
    %v297 = vpack.c.b16 %v254, %v253
    %v298 = vpack.c.b16 %v256, %v255
    %v299 = vpack.c.b16 %v258, %v257
    %v300 = vpack.c.b16 %v260, %v259
    %v301 = vpack.c.b16 %v262, %v261
    %v302 = vpack.c.b16 %v264, %v263
    %v303 = vpack.c.b16 %v266, %v265
    %v304 = vpack.c.b16 %v268, %v267
    %v305 = vpack.c.b16 %v270, %v269
    %v306 = vpack.c.b16 %v272, %v271
    %v307 = vpack.c.b16 %v274, %v273
    %v308 = vpack.c.b16 %v276, %v275
    %341 = vmatpush.bf16.msra.mxu0 %v284
    %342 = vmatpush.bf16.msra.mxu0 %v283
    %343 = vmatpush.bf16.msra.mxu0 %v282
    %344 = vmatpush.bf16.msra.mxu0 %v281
    %345 = vmatpush.bf16.msra.mxu0 %v280
    %346 = vmatpush.bf16.msra.mxu0 %v279
    %347 = vmatpush.bf16.msra.mxu0 %v278
    %348 = vmatpush.bf16.msra.mxu0 %v277
    %349 = vmatmul.bf16.gmra.mxu0 %v141
    %v350 = vpop.f32.mrf.mxu0
    %v351 = vadd.f32 %v127, %v350
    %v352 = vpop.f32.mrf.mxu0
    %v353 = vadd.f32 %v127, %v352
    %354 = vdwg.mxu0
    %355 = vmatpush.bf16.msra.mxu0 %v292
    %356 = vmatpush.bf16.msra.mxu0 %v291
    %357 = vmatpush.bf16.msra.mxu0 %v290
    %358 = vmatpush.bf16.msra.mxu0 %v289
    %359 = vmatpush.bf16.msra.mxu0 %v288
    %360 = vmatpush.bf16.msra.mxu0 %v287
    %361 = vmatpush.bf16.msra.mxu0 %v286
    %362 = vmatpush.bf16.msra.mxu0 %v285
    %363 = vmatmul.bf16.gmra.mxu0 %v142
    %v364 = vpop.f32.mrf.mxu0
    %v365 = vadd.f32 %v351, %v364
    %v366 = vpop.f32.mrf.mxu0
    %v367 = vadd.f32 %v353, %v366
    %368 = vdwg.mxu0
    %369 = vmatpush.bf16.msra.mxu0 %v300
    %370 = vmatpush.bf16.msra.mxu0 %v299
    %371 = vmatpush.bf16.msra.mxu0 %v298
    %372 = vmatpush.bf16.msra.mxu0 %v297
    %373 = vmatpush.bf16.msra.mxu0 %v296
    %374 = vmatpush.bf16.msra.mxu0 %v295
    %375 = vmatpush.bf16.msra.mxu0 %v294
    %376 = vmatpush.bf16.msra.mxu0 %v293
    %377 = vmatmul.bf16.gmra.mxu0 %v143
    %v378 = vpop.f32.mrf.mxu0
    %v379 = vadd.f32 %v365, %v378
    %v380 = vpop.f32.mrf.mxu0
    %v381 = vadd.f32 %v367, %v380
    %382 = vdwg.mxu0
    %383 = vmatpush.bf16.msra.mxu0 %v308
    %384 = vmatpush.bf16.msra.mxu0 %v307
    %385 = vmatpush.bf16.msra.mxu0 %v306
    %386 = vmatpush.bf16.msra.mxu0 %v305
    %387 = vmatpush.bf16.msra.mxu0 %v304
    %388 = vmatpush.bf16.msra.mxu0 %v303
    %389 = vmatpush.bf16.msra.mxu0 %v302
    %390 = vmatpush.bf16.msra.mxu0 %v301
    %391 = vmatmul.bf16.gmra.mxu0 %v144
    %v392 = vpop.f32.mrf.mxu0
    %v393 = vadd.f32 %v379, %v392
    %v394 = vpop.f32.mrf.mxu0
    %v395 = vadd.f32 %v381, %v394
    %396 = vdwg.mxu0
    %v397 = vmax.f32 %v393, 0.0
    %v398 = vmax.f32 %v395, 0.0
    %v399 = vpack.c.bf16 %v398, %v397
    %v400 = vld [vmem:[%s1] sm:$0xff]
    %v401 = vld [vmem:[%s1 + $0x8] sm:$0xff]
    %v402 = vld [vmem:[%s7] sm:$0xf]
    %v403 = vld [vmem:[%s7 + $0x4] sm:$0xf]
    %v404 = vld [vmem:[%s7 + $0x8] sm:$0xf]
    %v405 = vld [vmem:[%s7 + $0xc] sm:$0xf]
    %v406 = vld [vmem:[%s7 + $0x10] sm:$0xf]
    %v407 = vld [vmem:[%s7 + $0x14] sm:$0xf]
    %v408 = vld [vmem:[%s7 + $0x18] sm:$0xf]
    %v409 = vld [vmem:[%s7 + $0x1c] sm:$0xf]
    %v410 = vld [vmem:[%s7 + $0x20] sm:$0xf]
    %v411 = vld [vmem:[%s7 + $0x24] sm:$0xf]
    %v412 = vld [vmem:[%s7 + $0x28] sm:$0xf]
    %v413 = vld [vmem:[%s7 + $0x2c] sm:$0xf]
    %v414 = vld [vmem:[%s7 + $0x30] sm:$0xf]
    %v415 = vld [vmem:[%s7 + $0x34] sm:$0xf]
    %v416 = vld [vmem:[%s7 + $0x38] sm:$0xf]
    %v417 = vld [vmem:[%s7 + $0x3c] sm:$0xf]
    %v418 = vld [vmem:[%s7 + $0x40] sm:$0xf]
    %v419 = vld [vmem:[%s7 + $0x44] sm:$0xf]
    %v420 = vld [vmem:[%s7 + $0x48] sm:$0xf]
    %v421 = vld [vmem:[%s7 + $0x4c] sm:$0xf]
    %v422 = vld [vmem:[%s7 + $0x50] sm:$0xf]
    %v423 = vld [vmem:[%s7 + $0x54] sm:$0xf]
    %v424 = vld [vmem:[%s7 + $0x58] sm:$0xf]
    %v425 = vld [vmem:[%s7 + $0x5c] sm:$0xf]
    %v426 = vld [vmem:[%s7 + $0x60] sm:$0xf]
    %v427 = vld [vmem:[%s7 + $0x64] sm:$0xf]
    %v428 = vld [vmem:[%s7 + $0x68] sm:$0xf]
    %v429 = vld [vmem:[%s7 + $0x6c] sm:$0xf]
    %v430 = vld [vmem:[%s7 + $0x70] sm:$0xf]
    %v431 = vld [vmem:[%s7 + $0x74] sm:$0xf]
    %v432 = vld [vmem:[%s7 + $0x78] sm:$0xf]
    %v433 = vld [vmem:[%s7 + $0x7c] sm:$0xf]
    %v434 = vld [vmem:[%s8] sm:$0x1]
    %v436 = vperm.slane %v434, 0
    %v440 = vunpack.c.l.b16 %v400
    %v441 = vunpack.c.h.b16 %v400
    %v442 = vunpack.c.l.b16 %v401
    %v443 = vunpack.c.h.b16 %v401
    %v444 = vpack.c.b16 %v442, %v440
    %v445 = vpack.c.b16 %v443, %v441
    %v480 = vunpack.c.l.b16 %v402
    %v481 = vunpack.c.l.b16 %v403
    %v482 = vunpack.c.l.b16 %v404
    %v483 = vunpack.c.l.b16 %v405
    %v484 = vunpack.c.l.b16 %v406
    %v485 = vunpack.c.l.b16 %v407
    %v486 = vunpack.c.l.b16 %v408
    %v487 = vunpack.c.l.b16 %v409
    %v488 = vunpack.c.l.b16 %v410
    %v489 = vunpack.c.l.b16 %v411
    %v490 = vunpack.c.l.b16 %v412
    %v491 = vunpack.c.l.b16 %v413
    %v492 = vunpack.c.l.b16 %v414
    %v493 = vunpack.c.l.b16 %v415
    %v494 = vunpack.c.l.b16 %v416
    %v495 = vunpack.c.l.b16 %v417
    %v496 = vunpack.c.l.b16 %v418
    %v497 = vunpack.c.l.b16 %v419
    %v498 = vunpack.c.l.b16 %v420
    %v499 = vunpack.c.l.b16 %v421
    %v500 = vunpack.c.l.b16 %v422
    %v501 = vunpack.c.l.b16 %v423
    %v502 = vunpack.c.l.b16 %v424
    %v503 = vunpack.c.l.b16 %v425
    %v504 = vunpack.c.l.b16 %v426
    %v505 = vunpack.c.l.b16 %v427
    %v506 = vunpack.c.l.b16 %v428
    %v507 = vunpack.c.l.b16 %v429
    %v508 = vunpack.c.l.b16 %v430
    %v509 = vunpack.c.l.b16 %v431
    %v510 = vunpack.c.l.b16 %v432
    %v511 = vunpack.c.l.b16 %v433
    %v512 = vpack.c.b16 %v481, %v480
    %v513 = vpack.c.b16 %v483, %v482
    %v514 = vpack.c.b16 %v485, %v484
    %v515 = vpack.c.b16 %v487, %v486
    %v516 = vpack.c.b16 %v489, %v488
    %v517 = vpack.c.b16 %v491, %v490
    %v518 = vpack.c.b16 %v493, %v492
    %v519 = vpack.c.b16 %v495, %v494
    %v520 = vpack.c.b16 %v497, %v496
    %v521 = vpack.c.b16 %v499, %v498
    %v522 = vpack.c.b16 %v501, %v500
    %v523 = vpack.c.b16 %v503, %v502
    %v524 = vpack.c.b16 %v505, %v504
    %v525 = vpack.c.b16 %v507, %v506
    %v526 = vpack.c.b16 %v509, %v508
    %v527 = vpack.c.b16 %v511, %v510
    %544 = vmatpush.bf16.msra.mxu0 %v519
    %545 = vmatpush.bf16.msra.mxu0 %v518
    %546 = vmatpush.bf16.msra.mxu0 %v517
    %547 = vmatpush.bf16.msra.mxu0 %v516
    %548 = vmatpush.bf16.msra.mxu0 %v515
    %549 = vmatpush.bf16.msra.mxu0 %v514
    %550 = vmatpush.bf16.msra.mxu0 %v513
    %551 = vmatpush.bf16.msra.mxu0 %v512
    %552 = vmatmul.bf16.gmra.mxu0 %v444
    %v553 = vpop.f32.mrf.mxu0
    %v554 = vadd.f32 %v436, %v553
    %v555 = vpop.f32.mrf.mxu0
    %v556 = vadd.f32 %v436, %v555
    %557 = vdwg.mxu0
    %558 = vmatpush.bf16.msra.mxu0 %v527
    %559 = vmatpush.bf16.msra.mxu0 %v526
    %560 = vmatpush.bf16.msra.mxu0 %v525
    %561 = vmatpush.bf16.msra.mxu0 %v524
    %562 = vmatpush.bf16.msra.mxu0 %v523
    %563 = vmatpush.bf16.msra.mxu0 %v522
    %564 = vmatpush.bf16.msra.mxu0 %v521
    %565 = vmatpush.bf16.msra.mxu0 %v520
    %566 = vmatmul.bf16.gmra.mxu0 %v445
    %v567 = vpop.f32.mrf.mxu0
    %v568 = vadd.f32 %v554, %v567
    %v569 = vpop.f32.mrf.mxu0
    %v570 = vadd.f32 %v556, %v569
    %571 = vdwg.mxu0
    %v572 = vmax.f32 %v568, 0.0
    %v573 = vmax.f32 %v570, 0.0
    %v574 = vpack.c.bf16 %v573, %v572
    %v575 = vld [vmem:[%s2] sm:$0xf]
    %v576 = vld [vmem:[%s2 + $0x4] sm:$0xf]
    %v577 = vld [vmem:[%s9] sm:$0xff]
    %v578 = vld [vmem:[%s9 + $0x8] sm:$0xff]
    %v579 = vld [vmem:[%s9 + $0x10] sm:$0xff]
    %v580 = vld [vmem:[%s9 + $0x18] sm:$0xff]
    %v581 = vld [vmem:[%s9 + $0x20] sm:$0xff]
    %v582 = vld [vmem:[%s9 + $0x28] sm:$0xff]
    %v583 = vld [vmem:[%s9 + $0x30] sm:$0xff]
    %v584 = vld [vmem:[%s9 + $0x38] sm:$0xff]
    %v585 = vld [vmem:[%s9 + $0x40] sm:$0xff]
    %v586 = vld [vmem:[%s9 + $0x48] sm:$0xff]
    %v587 = vld [vmem:[%s9 + $0x50] sm:$0xff]
    %v588 = vld [vmem:[%s9 + $0x58] sm:$0xff]
    %v589 = vld [vmem:[%s9 + $0x60] sm:$0xff]
    %v590 = vld [vmem:[%s9 + $0x68] sm:$0xff]
    %v591 = vld [vmem:[%s9 + $0x70] sm:$0xff]
    %v592 = vld [vmem:[%s9 + $0x78] sm:$0xff]
    %v593 = vld [vmem:[%s10] sm:$0xff]
    %v594 = vld [vmem:[%s10 + $0x8] sm:$0xff]
    %v595 = vld [vmem:[%s10 + $0x10] sm:$0xff]
    %v596 = vld [vmem:[%s10 + $0x18] sm:$0xff]
    %v597 = vld [vmem:[%s10 + $0x20] sm:$0xff]
    %v598 = vld [vmem:[%s10 + $0x28] sm:$0xff]
    %v599 = vld [vmem:[%s10 + $0x30] sm:$0xff]
    %v600 = vld [vmem:[%s10 + $0x38] sm:$0xff]
    %v601 = vld [vmem:[%s10 + $0x40] sm:$0xff]
    %v602 = vld [vmem:[%s10 + $0x48] sm:$0xff]
    %v603 = vld [vmem:[%s10 + $0x50] sm:$0xff]
    %v604 = vld [vmem:[%s10 + $0x58] sm:$0xff]
    %v605 = vld [vmem:[%s10 + $0x60] sm:$0xff]
    %v606 = vld [vmem:[%s10 + $0x68] sm:$0xff]
    %v607 = vld [vmem:[%s10 + $0x70] sm:$0xff]
    %v608 = vld [vmem:[%s10 + $0x78] sm:$0xff]
    %v625 = vunpack.c.l.b16 %v593
    %v626 = vunpack.c.h.b16 %v593
    %v627 = vunpack.c.l.b16 %v594
    %v628 = vunpack.c.h.b16 %v594
    %v629 = vunpack.c.l.b16 %v595
    %v630 = vunpack.c.h.b16 %v595
    %v631 = vunpack.c.l.b16 %v596
    %v632 = vunpack.c.h.b16 %v596
    %v633 = vunpack.c.l.b16 %v597
    %v634 = vunpack.c.h.b16 %v597
    %v635 = vunpack.c.l.b16 %v598
    %v636 = vunpack.c.h.b16 %v598
    %v637 = vunpack.c.l.b16 %v599
    %v638 = vunpack.c.h.b16 %v599
    %v639 = vunpack.c.l.b16 %v600
    %v640 = vunpack.c.h.b16 %v600
    %v641 = vunpack.c.l.b16 %v601
    %v642 = vunpack.c.h.b16 %v601
    %v643 = vunpack.c.l.b16 %v602
    %v644 = vunpack.c.h.b16 %v602
    %v645 = vunpack.c.l.b16 %v603
    %v646 = vunpack.c.h.b16 %v603
    %v647 = vunpack.c.l.b16 %v604
    %v648 = vunpack.c.h.b16 %v604
    %v649 = vunpack.c.l.b16 %v605
    %v650 = vunpack.c.h.b16 %v605
    %v651 = vunpack.c.l.b16 %v606
    %v652 = vunpack.c.h.b16 %v606
    %v653 = vunpack.c.l.b16 %v607
    %v654 = vunpack.c.h.b16 %v607
    %v655 = vunpack.c.l.b16 %v608
    %v656 = vunpack.c.h.b16 %v608
    %v657 = vpack.c.b16 %v627, %v625
    %v658 = vpack.c.b16 %v628, %v626
    %v659 = vpack.c.b16 %v631, %v629
    %v660 = vpack.c.b16 %v632, %v630
    %v661 = vpack.c.b16 %v635, %v633
    %v662 = vpack.c.b16 %v636, %v634
    %v663 = vpack.c.b16 %v639, %v637
    %v664 = vpack.c.b16 %v640, %v638
    %v665 = vpack.c.b16 %v643, %v641
    %v666 = vpack.c.b16 %v644, %v642
    %v667 = vpack.c.b16 %v647, %v645
    %v668 = vpack.c.b16 %v648, %v646
    %v669 = vpack.c.b16 %v651, %v649
    %v670 = vpack.c.b16 %v652, %v650
    %v671 = vpack.c.b16 %v655, %v653
    %v672 = vpack.c.b16 %v656, %v654
    %689 = vmatpush.bf16.msra.mxu0 %v671
    %690 = vmatpush.bf16.msra.mxu0 %v669
    %691 = vmatpush.bf16.msra.mxu0 %v667
    %692 = vmatpush.bf16.msra.mxu0 %v665
    %693 = vmatpush.bf16.msra.mxu0 %v663
    %694 = vmatpush.bf16.msra.mxu0 %v661
    %695 = vmatpush.bf16.msra.mxu0 %v659
    %696 = vmatpush.bf16.msra.mxu0 %v657
    %697 = vmatmul.bf16.gmra.mxu0 %v574
    %v698 = vpop.f32.mrf.mxu0
    %v699 = vadd.f32 0.0, %v698
    %v700 = vpop.f32.mrf.mxu0
    %v701 = vadd.f32 0.0, %v700
    %702 = vdwg.mxu0
    %703 = vmatpush.bf16.msra.mxu0 %v672
    %704 = vmatpush.bf16.msra.mxu0 %v670
    %705 = vmatpush.bf16.msra.mxu0 %v668
    %706 = vmatpush.bf16.msra.mxu0 %v666
    %707 = vmatpush.bf16.msra.mxu0 %v664
    %708 = vmatpush.bf16.msra.mxu0 %v662
    %709 = vmatpush.bf16.msra.mxu0 %v660
    %710 = vmatpush.bf16.msra.mxu0 %v658
    %711 = vmatmul.bf16.gmra.mxu0 %v574
    %v712 = vpop.f32.mrf.mxu0
    %v713 = vadd.f32 0.0, %v712
    %v714 = vpop.f32.mrf.mxu0
    %v715 = vadd.f32 0.0, %v714
    %716 = vdwg.mxu0
    %v733 = vunpack.c.l.b16 %v577
    %v734 = vunpack.c.h.b16 %v577
    %v735 = vunpack.c.l.b16 %v578
    %v736 = vunpack.c.h.b16 %v578
    %v737 = vunpack.c.l.b16 %v579
    %v738 = vunpack.c.h.b16 %v579
    %v739 = vunpack.c.l.b16 %v580
    %v740 = vunpack.c.h.b16 %v580
    %v741 = vunpack.c.l.b16 %v581
    %v742 = vunpack.c.h.b16 %v581
    %v743 = vunpack.c.l.b16 %v582
    %v744 = vunpack.c.h.b16 %v582
    %v745 = vunpack.c.l.b16 %v583
    %v746 = vunpack.c.h.b16 %v583
    %v747 = vunpack.c.l.b16 %v584
    %v748 = vunpack.c.h.b16 %v584
    %v749 = vunpack.c.l.b16 %v585
    %v750 = vunpack.c.h.b16 %v585
    %v751 = vunpack.c.l.b16 %v586
    %v752 = vunpack.c.h.b16 %v586
    %v753 = vunpack.c.l.b16 %v587
    %v754 = vunpack.c.h.b16 %v587
    %v755 = vunpack.c.l.b16 %v588
    %v756 = vunpack.c.h.b16 %v588
    %v757 = vunpack.c.l.b16 %v589
    %v758 = vunpack.c.h.b16 %v589
    %v759 = vunpack.c.l.b16 %v590
    %v760 = vunpack.c.h.b16 %v590
    %v761 = vunpack.c.l.b16 %v591
    %v762 = vunpack.c.h.b16 %v591
    %v763 = vunpack.c.l.b16 %v592
    %v764 = vunpack.c.h.b16 %v592
    %v765 = vpack.c.b16 %v735, %v733
    %v766 = vpack.c.b16 %v736, %v734
    %v767 = vpack.c.b16 %v739, %v737
    %v768 = vpack.c.b16 %v740, %v738
    %v769 = vpack.c.b16 %v743, %v741
    %v770 = vpack.c.b16 %v744, %v742
    %v771 = vpack.c.b16 %v747, %v745
    %v772 = vpack.c.b16 %v748, %v746
    %v773 = vpack.c.b16 %v751, %v749
    %v774 = vpack.c.b16 %v752, %v750
    %v775 = vpack.c.b16 %v755, %v753
    %v776 = vpack.c.b16 %v756, %v754
    %v777 = vpack.c.b16 %v759, %v757
    %v778 = vpack.c.b16 %v760, %v758
    %v779 = vpack.c.b16 %v763, %v761
    %v780 = vpack.c.b16 %v764, %v762
    %797 = vmatpush.bf16.msra.mxu0 %v779
    %798 = vmatpush.bf16.msra.mxu0 %v777
    %799 = vmatpush.bf16.msra.mxu0 %v775
    %800 = vmatpush.bf16.msra.mxu0 %v773
    %801 = vmatpush.bf16.msra.mxu0 %v771
    %802 = vmatpush.bf16.msra.mxu0 %v769
    %803 = vmatpush.bf16.msra.mxu0 %v767
    %804 = vmatpush.bf16.msra.mxu0 %v765
    %805 = vmatmul.bf16.gmra.mxu0 %v399
    %v806 = vpop.f32.mrf.mxu0
    %v807 = vadd.f32 %v699, %v806
    %v808 = vpop.f32.mrf.mxu0
    %v809 = vadd.f32 %v701, %v808
    %810 = vdwg.mxu0
    %811 = vmatpush.bf16.msra.mxu0 %v780
    %812 = vmatpush.bf16.msra.mxu0 %v778
    %813 = vmatpush.bf16.msra.mxu0 %v776
    %814 = vmatpush.bf16.msra.mxu0 %v774
    %815 = vmatpush.bf16.msra.mxu0 %v772
    %816 = vmatpush.bf16.msra.mxu0 %v770
    %817 = vmatpush.bf16.msra.mxu0 %v768
    %818 = vmatpush.bf16.msra.mxu0 %v766
    %819 = vmatmul.bf16.gmra.mxu0 %v399
    %v820 = vpop.f32.mrf.mxu0
    %v821 = vadd.f32 %v713, %v820
    %v822 = vpop.f32.mrf.mxu0
    %v823 = vadd.f32 %v715, %v822
    %824 = vdwg.mxu0
    %v825 = vpack.c.bf16 %v809, %v807
    %v826 = vpack.c.bf16 %v823, %v821
    %v827 = vld [vmem:[%s11] sm:$0x3]
    %v829 = vperm.slane %v827, 0
    %v830 = vperm.slane %v827, 1
    %v835 = vunpack.c.l.b16 %v575
    %v836 = vunpack.c.l.b16 %v576
    %v837 = vpack.c.b16 %v836, %v835
    %vm838 = vcmask 130048
    %v840 = vsel %vm838, %v837, 0
    %842 = vmatpush.bf16.msra.mxu0 0
    %843 = vmatpush.bf16.msra.mxu0 0
    %844 = vmatpush.bf16.msra.mxu0 0
    %845 = vmatpush.bf16.msra.mxu0 0
    %846 = vmatpush.bf16.msra.mxu0 0
    %847 = vmatpush.bf16.msra.mxu0 0
    %848 = vmatpush.bf16.msra.mxu0 0
    %849 = vmatpush.bf16.msra.mxu0 %v825
    %850 = vmatmul.bf16.gmra.mxu0 %v840
    %v851 = vpop.f32.mrf.mxu0
    %v852 = vadd.f32 %v829, %v851
    %v853 = vpop.f32.mrf.mxu0
    %v854 = vadd.f32 %v829, %v853
    %855 = vdwg.mxu0
    %856 = vmatpush.bf16.msra.mxu0 0
    %857 = vmatpush.bf16.msra.mxu0 0
    %858 = vmatpush.bf16.msra.mxu0 0
    %859 = vmatpush.bf16.msra.mxu0 0
    %860 = vmatpush.bf16.msra.mxu0 0
    %861 = vmatpush.bf16.msra.mxu0 0
    %862 = vmatpush.bf16.msra.mxu0 0
    %863 = vmatpush.bf16.msra.mxu0 %v826
    %864 = vmatmul.bf16.gmra.mxu0 %v840
    %v865 = vpop.f32.mrf.mxu0
    %v866 = vadd.f32 %v830, %v865
    %v867 = vpop.f32.mrf.mxu0
    %v868 = vadd.f32 %v830, %v867
    %869 = vdwg.mxu0
    %v870 = vmax.f32 %v852, 0.0
    %v871 = vmax.f32 %v866, 0.0
    %v872 = vmax.f32 %v854, 0.0
    %v873 = vmax.f32 %v868, 0.0
    %v874 = vpack.c.bf16 %v872, %v870
    %v875 = vpack.c.bf16 %v873, %v871
    %v876 = vld [vmem:[%s12] sm:$0xff]
    %v877 = vld [vmem:[%s12 + $0x8] sm:$0xff]
    %v878 = vld [vmem:[%s12 + $0x10] sm:$0xff]
    %v879 = vld [vmem:[%s12 + $0x18] sm:$0xff]
    %v880 = vld [vmem:[%s12 + $0x20] sm:$0xff]
    %v881 = vld [vmem:[%s12 + $0x28] sm:$0xff]
    %v882 = vld [vmem:[%s12 + $0x30] sm:$0xff]
    %v883 = vld [vmem:[%s12 + $0x38] sm:$0xff]
    %v884 = vld [vmem:[%s12 + $0x40] sm:$0xff]
    %v885 = vld [vmem:[%s12 + $0x48] sm:$0xff]
    %v886 = vld [vmem:[%s12 + $0x50] sm:$0xff]
    %v887 = vld [vmem:[%s12 + $0x58] sm:$0xff]
    %v888 = vld [vmem:[%s12 + $0x60] sm:$0xff]
    %v889 = vld [vmem:[%s12 + $0x68] sm:$0xff]
    %v890 = vld [vmem:[%s12 + $0x70] sm:$0xff]
    %v891 = vld [vmem:[%s12 + $0x78] sm:$0xff]
    %v892 = vld [vmem:[%s12 + $0x80] sm:$0xff]
    %v893 = vld [vmem:[%s12 + $0x88] sm:$0xff]
    %v894 = vld [vmem:[%s12 + $0x90] sm:$0xff]
    %v895 = vld [vmem:[%s12 + $0x98] sm:$0xff]
    %v896 = vld [vmem:[%s12 + $0xa0] sm:$0xff]
    %v897 = vld [vmem:[%s12 + $0xa8] sm:$0xff]
    %v898 = vld [vmem:[%s12 + $0xb0] sm:$0xff]
    %v899 = vld [vmem:[%s12 + $0xb8] sm:$0xff]
    %v900 = vld [vmem:[%s12 + $0xc0] sm:$0xff]
    %v901 = vld [vmem:[%s12 + $0xc8] sm:$0xff]
    %v902 = vld [vmem:[%s12 + $0xd0] sm:$0xff]
    %v903 = vld [vmem:[%s12 + $0xd8] sm:$0xff]
    %v904 = vld [vmem:[%s12 + $0xe0] sm:$0xff]
    %v905 = vld [vmem:[%s12 + $0xe8] sm:$0xff]
    %v906 = vld [vmem:[%s12 + $0xf0] sm:$0xff]
    %v907 = vld [vmem:[%s12 + $0xf8] sm:$0xff]
    %v940 = vunpack.c.l.b16 %v876
    %v941 = vunpack.c.h.b16 %v876
    %v942 = vunpack.c.l.b16 %v877
    %v943 = vunpack.c.h.b16 %v877
    %v944 = vunpack.c.l.b16 %v878
    %v945 = vunpack.c.h.b16 %v878
    %v946 = vunpack.c.l.b16 %v879
    %v947 = vunpack.c.h.b16 %v879
    %v948 = vunpack.c.l.b16 %v880
    %v949 = vunpack.c.h.b16 %v880
    %v950 = vunpack.c.l.b16 %v881
    %v951 = vunpack.c.h.b16 %v881
    %v952 = vunpack.c.l.b16 %v882
    %v953 = vunpack.c.h.b16 %v882
    %v954 = vunpack.c.l.b16 %v883
    %v955 = vunpack.c.h.b16 %v883
    %v956 = vunpack.c.l.b16 %v884
    %v957 = vunpack.c.h.b16 %v884
    %v958 = vunpack.c.l.b16 %v885
    %v959 = vunpack.c.h.b16 %v885
    %v960 = vunpack.c.l.b16 %v886
    %v961 = vunpack.c.h.b16 %v886
    %v962 = vunpack.c.l.b16 %v887
    %v963 = vunpack.c.h.b16 %v887
    %v964 = vunpack.c.l.b16 %v888
    %v965 = vunpack.c.h.b16 %v888
    %v966 = vunpack.c.l.b16 %v889
    %v967 = vunpack.c.h.b16 %v889
    %v968 = vunpack.c.l.b16 %v890
    %v969 = vunpack.c.h.b16 %v890
    %v970 = vunpack.c.l.b16 %v891
    %v971 = vunpack.c.h.b16 %v891
    %v972 = vunpack.c.l.b16 %v892
    %v973 = vunpack.c.h.b16 %v892
    %v974 = vunpack.c.l.b16 %v893
    %v975 = vunpack.c.h.b16 %v893
    %v976 = vunpack.c.l.b16 %v894
    %v977 = vunpack.c.h.b16 %v894
    %v978 = vunpack.c.l.b16 %v895
    %v979 = vunpack.c.h.b16 %v895
    %v980 = vunpack.c.l.b16 %v896
    %v981 = vunpack.c.h.b16 %v896
    %v982 = vunpack.c.l.b16 %v897
    %v983 = vunpack.c.h.b16 %v897
    %v984 = vunpack.c.l.b16 %v898
    %v985 = vunpack.c.h.b16 %v898
    %v986 = vunpack.c.l.b16 %v899
    %v987 = vunpack.c.h.b16 %v899
    %v988 = vunpack.c.l.b16 %v900
    %v989 = vunpack.c.h.b16 %v900
    %v990 = vunpack.c.l.b16 %v901
    %v991 = vunpack.c.h.b16 %v901
    %v992 = vunpack.c.l.b16 %v902
    %v993 = vunpack.c.h.b16 %v902
    %v994 = vunpack.c.l.b16 %v903
    %v995 = vunpack.c.h.b16 %v903
    %v996 = vunpack.c.l.b16 %v904
    %v997 = vunpack.c.h.b16 %v904
    %v998 = vunpack.c.l.b16 %v905
    %v999 = vunpack.c.h.b16 %v905
    %v1000 = vunpack.c.l.b16 %v906
    %v1001 = vunpack.c.h.b16 %v906
    %v1002 = vunpack.c.l.b16 %v907
    %v1003 = vunpack.c.h.b16 %v907
    %v1004 = vpack.c.b16 %v942, %v940
    %v1005 = vpack.c.b16 %v943, %v941
    %v1006 = vpack.c.b16 %v946, %v944
    %v1007 = vpack.c.b16 %v947, %v945
    %v1008 = vpack.c.b16 %v950, %v948
    %v1009 = vpack.c.b16 %v951, %v949
    %v1010 = vpack.c.b16 %v954, %v952
    %v1011 = vpack.c.b16 %v955, %v953
    %v1012 = vpack.c.b16 %v958, %v956
    %v1013 = vpack.c.b16 %v959, %v957
    %v1014 = vpack.c.b16 %v962, %v960
    %v1015 = vpack.c.b16 %v963, %v961
    %v1016 = vpack.c.b16 %v966, %v964
    %v1017 = vpack.c.b16 %v967, %v965
    %v1018 = vpack.c.b16 %v970, %v968
    %v1019 = vpack.c.b16 %v971, %v969
    %v1020 = vpack.c.b16 %v974, %v972
    %v1021 = vpack.c.b16 %v975, %v973
    %v1022 = vpack.c.b16 %v978, %v976
    %v1023 = vpack.c.b16 %v979, %v977
    %v1024 = vpack.c.b16 %v982, %v980
    %v1025 = vpack.c.b16 %v983, %v981
    %v1026 = vpack.c.b16 %v986, %v984
    %v1027 = vpack.c.b16 %v987, %v985
    %v1028 = vpack.c.b16 %v990, %v988
    %v1029 = vpack.c.b16 %v991, %v989
    %v1030 = vpack.c.b16 %v994, %v992
    %v1031 = vpack.c.b16 %v995, %v993
    %v1032 = vpack.c.b16 %v998, %v996
    %v1033 = vpack.c.b16 %v999, %v997
    %v1034 = vpack.c.b16 %v1002, %v1000
    %v1035 = vpack.c.b16 %v1003, %v1001
    %1068 = vmatpush.bf16.msra.mxu0 %v1018
    %1069 = vmatpush.bf16.msra.mxu0 %v1016
    %1070 = vmatpush.bf16.msra.mxu0 %v1014
    %1071 = vmatpush.bf16.msra.mxu0 %v1012
    %1072 = vmatpush.bf16.msra.mxu0 %v1010
    %1073 = vmatpush.bf16.msra.mxu0 %v1008
    %1074 = vmatpush.bf16.msra.mxu0 %v1006
    %1075 = vmatpush.bf16.msra.mxu0 %v1004
    %1076 = vmatmul.bf16.gmra.mxu0 %v874
    %v1077 = vpop.f32.mrf.mxu0
    %v1078 = vadd.f32 0.0, %v1077
    %v1079 = vpop.f32.mrf.mxu0
    %v1080 = vadd.f32 0.0, %v1079
    %1081 = vdwg.mxu0
    %1082 = vmatpush.bf16.msra.mxu0 %v1034
    %1083 = vmatpush.bf16.msra.mxu0 %v1032
    %1084 = vmatpush.bf16.msra.mxu0 %v1030
    %1085 = vmatpush.bf16.msra.mxu0 %v1028
    %1086 = vmatpush.bf16.msra.mxu0 %v1026
    %1087 = vmatpush.bf16.msra.mxu0 %v1024
    %1088 = vmatpush.bf16.msra.mxu0 %v1022
    %1089 = vmatpush.bf16.msra.mxu0 %v1020
    %1090 = vmatmul.bf16.gmra.mxu0 %v875
    %v1091 = vpop.f32.mrf.mxu0
    %v1092 = vadd.f32 %v1078, %v1091
    %v1093 = vpop.f32.mrf.mxu0
    %v1094 = vadd.f32 %v1080, %v1093
    %1095 = vdwg.mxu0
    %1096 = vmatpush.bf16.msra.mxu0 %v1019
    %1097 = vmatpush.bf16.msra.mxu0 %v1017
    %1098 = vmatpush.bf16.msra.mxu0 %v1015
    %1099 = vmatpush.bf16.msra.mxu0 %v1013
    %1100 = vmatpush.bf16.msra.mxu0 %v1011
    %1101 = vmatpush.bf16.msra.mxu0 %v1009
    %1102 = vmatpush.bf16.msra.mxu0 %v1007
    %1103 = vmatpush.bf16.msra.mxu0 %v1005
    %1104 = vmatmul.bf16.gmra.mxu0 %v874
    %v1105 = vpop.f32.mrf.mxu0
    %v1106 = vadd.f32 0.0, %v1105
    %v1107 = vpop.f32.mrf.mxu0
    %v1108 = vadd.f32 0.0, %v1107
    %1109 = vdwg.mxu0
    %1110 = vmatpush.bf16.msra.mxu0 %v1035
    %1111 = vmatpush.bf16.msra.mxu0 %v1033
    %1112 = vmatpush.bf16.msra.mxu0 %v1031
    %1113 = vmatpush.bf16.msra.mxu0 %v1029
    %1114 = vmatpush.bf16.msra.mxu0 %v1027
    %1115 = vmatpush.bf16.msra.mxu0 %v1025
    %1116 = vmatpush.bf16.msra.mxu0 %v1023
    %1117 = vmatpush.bf16.msra.mxu0 %v1021
    %1118 = vmatmul.bf16.gmra.mxu0 %v875
    %v1119 = vpop.f32.mrf.mxu0
    %v1120 = vadd.f32 %v1106, %v1119
    %v1121 = vpop.f32.mrf.mxu0
    %v1122 = vadd.f32 %v1108, %v1121
    %1123 = vdwg.mxu0
    %v1124 = vpack.c.bf16 %v1094, %v1092
    %v1125 = vpack.c.bf16 %v1122, %v1120
    %v1126 = vld [vmem:[%s13] sm:$0x3]
    %v1128 = vperm.slane %v1126, 0
    %v1129 = vperm.slane %v1126, 1
    %1132 = vmatpush.bf16.msra.mxu0 0
    %1133 = vmatpush.bf16.msra.mxu0 0
    %1134 = vmatpush.bf16.msra.mxu0 0
    %1135 = vmatpush.bf16.msra.mxu0 0
    %1136 = vmatpush.bf16.msra.mxu0 0
    %1137 = vmatpush.bf16.msra.mxu0 0
    %1138 = vmatpush.bf16.msra.mxu0 0
    %1139 = vmatpush.bf16.msra.mxu0 %v1124
    %1140 = vmatmul.bf16.gmra.mxu0 %v840
    %v1141 = vpop.f32.mrf.mxu0
    %v1142 = vadd.f32 %v1128, %v1141
    %v1143 = vpop.f32.mrf.mxu0
    %v1144 = vadd.f32 %v1128, %v1143
    %1145 = vdwg.mxu0
    %1146 = vmatpush.bf16.msra.mxu0 0
    %1147 = vmatpush.bf16.msra.mxu0 0
    %1148 = vmatpush.bf16.msra.mxu0 0
    %1149 = vmatpush.bf16.msra.mxu0 0
    %1150 = vmatpush.bf16.msra.mxu0 0
    %1151 = vmatpush.bf16.msra.mxu0 0
    %1152 = vmatpush.bf16.msra.mxu0 0
    %1153 = vmatpush.bf16.msra.mxu0 %v1125
    %1154 = vmatmul.bf16.gmra.mxu0 %v840
    %v1155 = vpop.f32.mrf.mxu0
    %v1156 = vadd.f32 %v1129, %v1155
    %v1157 = vpop.f32.mrf.mxu0
    %v1158 = vadd.f32 %v1129, %v1157
    %1159 = vdwg.mxu0
    %v1160 = vmax.f32 %v1142, 0.0
    %v1161 = vmax.f32 %v1156, 0.0
    %v1162 = vmax.f32 %v1144, 0.0
    %v1163 = vmax.f32 %v1158, 0.0
    %v1164 = vpack.c.bf16 %v1162, %v1160
    %v1165 = vpack.c.bf16 %v1163, %v1161
    %v1166 = vld [vmem:[%s3] sm:$0xf]
    %v1168 = vsel %vm838, %v1166, 0
    %1170 = vmatpush.bf16.msra.mxu0 0
    %1171 = vmatpush.bf16.msra.mxu0 0
    %1172 = vmatpush.bf16.msra.mxu0 0
    %1173 = vmatpush.bf16.msra.mxu0 0
    %1174 = vmatpush.bf16.msra.mxu0 0
    %1175 = vmatpush.bf16.msra.mxu0 0
    %1176 = vmatpush.bf16.msra.mxu0 0
    %1177 = vmatpush.bf16.msra.mxu0 %v1164
    %1178 = vmatmul.bf16.gmra.mxu0 %v1168
    %v1179 = vpop.f32.mrf.mxu0
    %v1180 = vadd.f32 0.0, %v1179
    %v1181 = vpop.f32.mrf.mxu0
    %1182 = vdwg.mxu0
    %1183 = vmatpush.bf16.msra.mxu0 0
    %1184 = vmatpush.bf16.msra.mxu0 0
    %1185 = vmatpush.bf16.msra.mxu0 0
    %1186 = vmatpush.bf16.msra.mxu0 0
    %1187 = vmatpush.bf16.msra.mxu0 0
    %1188 = vmatpush.bf16.msra.mxu0 0
    %1189 = vmatpush.bf16.msra.mxu0 0
    %1190 = vmatpush.bf16.msra.mxu0 %v1165
    %1191 = vmatmul.bf16.gmra.mxu0 %v1168
    %v1192 = vpop.f32.mrf.mxu0
    %v1193 = vadd.f32 0.0, %v1192
    %v1194 = vpop.f32.mrf.mxu0
    %1195 = vdwg.mxu0
    %v1196 = vpack.c.bf16 %v1180, %v1180
    %v1197 = vpack.c.bf16 %v1193, %v1193
    %v1198 = vld [vmem:[%s14] sm:$0xf]
    %v1199 = vld [vmem:[%s14 + $0x4] sm:$0xf]
    %v1200 = vld [vmem:[%s14 + $0x8] sm:$0xf]
    %v1201 = vld [vmem:[%s14 + $0xc] sm:$0xf]
    %v1202 = vld [vmem:[%s14 + $0x10] sm:$0xf]
    %v1203 = vld [vmem:[%s14 + $0x14] sm:$0xf]
    %v1204 = vld [vmem:[%s14 + $0x18] sm:$0xf]
    %v1205 = vld [vmem:[%s14 + $0x1c] sm:$0xf]
    %v1206 = vld [vmem:[%s14 + $0x20] sm:$0xf]
    %v1207 = vld [vmem:[%s14 + $0x24] sm:$0xf]
    %v1208 = vld [vmem:[%s14 + $0x28] sm:$0xf]
    %v1209 = vld [vmem:[%s14 + $0x2c] sm:$0xf]
    %v1210 = vld [vmem:[%s14 + $0x30] sm:$0xf]
    %v1211 = vld [vmem:[%s14 + $0x34] sm:$0xf]
    %v1212 = vld [vmem:[%s14 + $0x38] sm:$0xf]
    %v1213 = vld [vmem:[%s14 + $0x3c] sm:$0xf]
    %v1214 = vld [vmem:[%s14 + $0x40] sm:$0xf]
    %v1215 = vld [vmem:[%s14 + $0x44] sm:$0xf]
    %v1216 = vld [vmem:[%s14 + $0x48] sm:$0xf]
    %v1217 = vld [vmem:[%s14 + $0x4c] sm:$0xf]
    %v1218 = vld [vmem:[%s14 + $0x50] sm:$0xf]
    %v1219 = vld [vmem:[%s14 + $0x54] sm:$0xf]
    %v1220 = vld [vmem:[%s14 + $0x58] sm:$0xf]
    %v1221 = vld [vmem:[%s14 + $0x5c] sm:$0xf]
    %v1222 = vld [vmem:[%s14 + $0x60] sm:$0xf]
    %v1223 = vld [vmem:[%s14 + $0x64] sm:$0xf]
    %v1224 = vld [vmem:[%s14 + $0x68] sm:$0xf]
    %v1225 = vld [vmem:[%s14 + $0x6c] sm:$0xf]
    %v1226 = vld [vmem:[%s14 + $0x70] sm:$0xf]
    %v1227 = vld [vmem:[%s14 + $0x74] sm:$0xf]
    %v1228 = vld [vmem:[%s14 + $0x78] sm:$0xf]
    %v1229 = vld [vmem:[%s14 + $0x7c] sm:$0xf]
    %v1230 = vld [vmem:[%s15] sm:$0x1]
    %v1232 = vperm.slane %v1230, 0
    %v1266 = vunpack.c.l.b16 %v1198
    %v1267 = vunpack.c.l.b16 %v1199
    %v1268 = vunpack.c.l.b16 %v1200
    %v1269 = vunpack.c.l.b16 %v1201
    %v1270 = vunpack.c.l.b16 %v1202
    %v1271 = vunpack.c.l.b16 %v1203
    %v1272 = vunpack.c.l.b16 %v1204
    %v1273 = vunpack.c.l.b16 %v1205
    %v1274 = vunpack.c.l.b16 %v1206
    %v1275 = vunpack.c.l.b16 %v1207
    %v1276 = vunpack.c.l.b16 %v1208
    %v1277 = vunpack.c.l.b16 %v1209
    %v1278 = vunpack.c.l.b16 %v1210
    %v1279 = vunpack.c.l.b16 %v1211
    %v1280 = vunpack.c.l.b16 %v1212
    %v1281 = vunpack.c.l.b16 %v1213
    %v1282 = vunpack.c.l.b16 %v1214
    %v1283 = vunpack.c.l.b16 %v1215
    %v1284 = vunpack.c.l.b16 %v1216
    %v1285 = vunpack.c.l.b16 %v1217
    %v1286 = vunpack.c.l.b16 %v1218
    %v1287 = vunpack.c.l.b16 %v1219
    %v1288 = vunpack.c.l.b16 %v1220
    %v1289 = vunpack.c.l.b16 %v1221
    %v1290 = vunpack.c.l.b16 %v1222
    %v1291 = vunpack.c.l.b16 %v1223
    %v1292 = vunpack.c.l.b16 %v1224
    %v1293 = vunpack.c.l.b16 %v1225
    %v1294 = vunpack.c.l.b16 %v1226
    %v1295 = vunpack.c.l.b16 %v1227
    %v1296 = vunpack.c.l.b16 %v1228
    %v1297 = vunpack.c.l.b16 %v1229
    %v1298 = vpack.c.b16 %v1267, %v1266
    %v1299 = vpack.c.b16 %v1269, %v1268
    %v1300 = vpack.c.b16 %v1271, %v1270
    %v1301 = vpack.c.b16 %v1273, %v1272
    %v1302 = vpack.c.b16 %v1275, %v1274
    %v1303 = vpack.c.b16 %v1277, %v1276
    %v1304 = vpack.c.b16 %v1279, %v1278
    %v1305 = vpack.c.b16 %v1281, %v1280
    %v1306 = vpack.c.b16 %v1283, %v1282
    %v1307 = vpack.c.b16 %v1285, %v1284
    %v1308 = vpack.c.b16 %v1287, %v1286
    %v1309 = vpack.c.b16 %v1289, %v1288
    %v1310 = vpack.c.b16 %v1291, %v1290
    %v1311 = vpack.c.b16 %v1293, %v1292
    %v1312 = vpack.c.b16 %v1295, %v1294
    %v1313 = vpack.c.b16 %v1297, %v1296
    %1330 = vmatpush.bf16.msra.mxu0 %v1305
    %1331 = vmatpush.bf16.msra.mxu0 %v1304
    %1332 = vmatpush.bf16.msra.mxu0 %v1303
    %1333 = vmatpush.bf16.msra.mxu0 %v1302
    %1334 = vmatpush.bf16.msra.mxu0 %v1301
    %1335 = vmatpush.bf16.msra.mxu0 %v1300
    %1336 = vmatpush.bf16.msra.mxu0 %v1299
    %1337 = vmatpush.bf16.msra.mxu0 %v1298
    %1338 = vmatmul.bf16.gmra.mxu0 %v1196
    %v1339 = vpop.f32.mrf.mxu0
    %v1340 = vadd.f32 %v1232, %v1339
    %v1341 = vpop.f32.mrf.mxu0
    %1342 = vdwg.mxu0
    %1343 = vmatpush.bf16.msra.mxu0 %v1313
    %1344 = vmatpush.bf16.msra.mxu0 %v1312
    %1345 = vmatpush.bf16.msra.mxu0 %v1311
    %1346 = vmatpush.bf16.msra.mxu0 %v1310
    %1347 = vmatpush.bf16.msra.mxu0 %v1309
    %1348 = vmatpush.bf16.msra.mxu0 %v1308
    %1349 = vmatpush.bf16.msra.mxu0 %v1307
    %1350 = vmatpush.bf16.msra.mxu0 %v1306
    %1351 = vmatmul.bf16.gmra.mxu0 %v1197
    %v1352 = vpop.f32.mrf.mxu0
    %v1353 = vadd.f32 %v1340, %v1352
    %v1354 = vpop.f32.mrf.mxu0
    %1355 = vdwg.mxu0
    %1356 = vst [vmem:[%s16] sm:$0xff] %v1353
    %v1357 = vlaneseq
    %v1358 = vand.u32 %v1357, 127
    %vm1359 = vcmp.lt.s32.totalorder %v1358, 8
    %v1360 = vsel %vm1359, %v1353, -1e+30
    %1361 = vmax.xlane.f32.xlu0 %v1360
    %v1362 = vpop.xlane.xlu0 %1361
    %v1363 = vsub.f32 %v1360, %v1362
    %v1364 = vmul.f32 %v1363, 1.442695
    %v1365 = vpow.pop %v1364
    %1366 = vadd.xlane.f32.xlu0 %v1365
    %v1367 = vpop.xlane.xlu0 %1366
    %v1368 = vlog2.pop %v1367
    %v1369 = vmul.f32 %v1368, 0.6931472
    %v1370 = vsub.f32 %v1363, %v1369
    %v1371 = vld [vmem:[%s4] sm:$0xff]
    %v1372 = vmul.f32 %v1371, %v1370
    %1373 = vadd.xlane.f32.xlu0 %v1372
    %v1374 = vpop.xlane.xlu0 %1373
    %v1375 = vsub.f32 0.0, %v1374
    %vm1376 = vcmask 7168
    %v1377 = vsel %vm1376, %v1375, 0.0
    %1378 = vadd.xlane.f32.xlu0 %v1377
    %v1379 = vpop.xlane.xlu0 %1378
    %v1380 = vrot.slane %v1379, 4
    %v1381 = vadd.f32 %v1379, %v1380
    %v1382 = vrot.slane %v1381, 2
    %v1383 = vadd.f32 %v1381, %v1382
    %v1384 = vrot.slane %v1383, 1
    %v1385 = vadd.f32 %v1383, %v1384
    %s1386 = vtos %v1385
    %v1387 = vstv %s1386
    %v1388 = vmul.f32 %v1387, 0.5
    %vm1389 = vcmask 0
    %1390 = vst.msk [vmem:[#allocation2] sm:$0x1] %vm1389, %v1388
    // Predicated region
    $region66: #{sub_activity_forward.1} parent=1 // pred_check
      _
    $region67: #{sub_activity_forward.1} parent=1 // pred_check_branch
      %1392 = sbr.rel (0) target = $region69
    $region68: #{sub_activity_forward.1} parent=1 // pred_region
      _
    $region69: #{sub_activity_forward.1} parent=1 // pred_fallthru
      _
    // Predicated region
    $region70: #{sub_activity_forward.1} parent=1 // pred_check
      _
    $region71: #{sub_activity_forward.1} parent=1 // pred_check_branch
      %1394 = sbr.rel (0) target = $region73
    $region72: #{sub_activity_forward.1} parent=1 // pred_region
      %1396 = vsyncadd [#allocation3], 0
      %s1398 = sshll.u32 [#allocation2], 4
      %s1399 = int_to_ptr.vmem [resolvable:$true] %s1398
      %s1400 = sshll.u32 %s17, 4
      %s1401 = int_to_ptr.hbm [resolvable:$true] %s1400
      %1403 = dma.vmem_to_hbm [thread:$0]  %s1399, 16, %s1401, [#allocation3]
    $region73: #{sub_activity_forward.1} parent=1 // pred_fallthru
      _
    // Predicated region
    $region74: #{sub_activity_forward.1} parent=1 // pred_check
      _
    $region75: #{sub_activity_forward.1} parent=1 // pred_check_branch
      %1405 = sbr.rel (0) target = $region77
    $region76: #{sub_activity_forward.1} parent=1 // pred_region
      _
    $region77: #{sub_activity_forward.1} parent=1 // pred_fallthru
      _
    // Predicated region
    $region78: #{sub_activity_forward.1} parent=1 // pred_check
      _
    $region79: #{sub_activity_forward.1} parent=1 // pred_check_branch
      %1407 = sbr.rel (0) target = $region81
    $region80: #{sub_activity_forward.1} parent=1 // pred_region
      %1409 = dma.done [#allocation3], 16
    $region81: #{sub_activity_forward.1} parent=1 // pred_fallthru
      _
    %1410 = vsyncpa [#allocation3], 1

</llo_original>
